<compile_context>
chip_gen: v7x
topology: tpu7x:2x2x1
jax: 0.10.0
libtpu: 0.0.40
codegen_flags: <defaults>
</compile_context>

<pallas_src>
import functools

import jax
import jax.numpy as jnp
from jax import lax
from jax.experimental import pallas as pl
from jax.experimental.pallas import tpu as pltpu


def _pick_tile(dim, preferred):
    """Largest tile <= preferred that evenly divides dim (mult. of 8); else full dim."""
    if dim <= preferred:
        return dim
    t = preferred
    while t >= 8:
        if dim % t == 0:
            return t
        t //= 2
    return dim


def _pick_head_group(n_heads_total, preferred=4):
    """Largest divisor of n_heads_total that is <= preferred (heads per grid step)."""
    g = min(n_heads_total, preferred)
    while g > 1 and n_heads_total % g != 0:
        g -= 1
    return g


# ----------------------------------------------------------------------------
# Kernel 1: fused head-split projection       out[b, h] = x[b] @ w[h]
#   x: [B, S, D]   w: [Hn, D, dh]   ->   out: [B, Hn, S, dh]
# Processes `hg` heads per grid step so the activation tile is read once per group.
# ----------------------------------------------------------------------------
def _proj_kernel(x_ref, w_ref, o_ref, acc_ref, *, hg):
    @pl.when(pl.program_id(3) == 0)
    def _():
        acc_ref[...] = jnp.zeros_like(acc_ref)

    x = x_ref[0]                                               # [ts, td]
    for h in range(hg):                                        # unrolled MXU calls
        acc_ref[h] += jnp.dot(x, w_ref[h], preferred_element_type=jnp.float32)

    @pl.when(pl.program_id(3) == pl.num_programs(3) - 1)
    def _():
        o_ref[0] = acc_ref[...].astype(o_ref.dtype)


def head_projection(x, w_heads):
    """x: [B, S, D]; w_heads: [Hn, D, dh] -> [B, Hn, S, dh] (head split done in BlockSpec)."""
    B, S, D = x.shape
    Hn, _, dh = w_heads.shape
    ts = _pick_tile(S, 256)     # row tile
    td = _pick_tile(D, 512)     # contraction tile
    hg = _pick_head_group(Hn, 4)
    grid = (B, S // ts, Hn // hg, D // td)
    kernel = functools.partial(_proj_kernel, hg=hg)
    return pl.pallas_call(
        kernel,
        out_shape=jax.ShapeDtypeStruct((B, Hn, S, dh), x.dtype),
        grid_spec=pltpu.PrefetchScalarGridSpec(
            num_scalar_prefetch=0,
            grid=grid,
            in_specs=[
                pl.BlockSpec((1, ts, td), lambda b, s, h, kd: (b, s, kd)),
                pl.BlockSpec((hg, td, dh), lambda b, s, h, kd: (h, kd, 0)),
            ],
            out_specs=pl.BlockSpec((1, hg, ts, dh), lambda b, s, h, kd: (b, h, s, 0)),
            scratch_shapes=[pltpu.VMEM((hg, ts, dh), jnp.float32)],
        ),
        compiler_params=pltpu.CompilerParams(
            dimension_semantics=("parallel", "parallel", "parallel", "arbitrary")),
    )(x, w_heads)


# ----------------------------------------------------------------------------
# Kernel 2 (default): flash-style attention, online softmax over K/V tiles.
# Scale (1/sqrt(d_k)) is pre-folded into w_q, so q arrives pre-scaled.
# Processes all heads per grid step.  Never materializes [Sq, Sk] probs.
# ----------------------------------------------------------------------------
def _flash_kernel(q_ref, k_ref, v_ref, o_ref, m_sc, l_sc, acc_sc):
    kv = pl.program_id(2)

    @pl.when(kv == 0)
    def _():
        m_sc[...] = jnp.full_like(m_sc, -jnp.inf)
        l_sc[...] = jnp.zeros_like(l_sc)
        acc_sc[...] = jnp.zeros_like(acc_sc)

    q = q_ref[0]                                               # [H, tq, dk] (pre-scaled)
    k = k_ref[0]                                               # [H, tk, dk]
    v = v_ref[0]                                               # [H, tk, dv]

    # scores: contract last axes of q/k directly (no explicit k.T)
    s = lax.dot_general(q, k, (((2,), (2,)), ((0,), (0,))),
                        preferred_element_type=jnp.float32)    # [H, tq, tk]

    m_prev = m_sc[...]
    m_new = jnp.maximum(m_prev, s.max(-1, keepdims=True))
    alpha = jnp.exp(m_prev - m_new)
    p = jnp.exp(s - m_new)
    l_sc[...] = alpha * l_sc[...] + p.sum(-1, keepdims=True)
    acc_sc[...] = alpha * acc_sc[...] + lax.dot_general(
        p.astype(v.dtype), v, (((2,), (1,)), ((0,), (0,))),
        preferred_element_type=jnp.float32)                    # [H, tq, dv]
    m_sc[...] = m_new

    @pl.when(kv == pl.num_programs(2) - 1)
    def _():
        inv_l = pl.reciprocal(l_sc[...], approx=True)
        o_ref[0] = (acc_sc[...] * inv_l).astype(o_ref.dtype)


def flash_attention(qh, kh, vh, *, n_heads, d_k, d_v, head_blocks):
    """qh/kh/vh: [B, *, S, d] (may be the same fused [B, 3H, S, d] array)."""
    B = qh.shape[0]
    Sq = qh.shape[2]
    Sk = kh.shape[2]
    tq = _pick_tile(Sq, 256)
    tk = _pick_tile(Sk, 256)
    qb, kb, vb = head_blocks                                   # block indices along head dim
    return pl.pallas_call(
        _flash_kernel,
        out_shape=jax.ShapeDtypeStruct((B, n_heads, Sq, d_v), qh.dtype),
        grid_spec=pltpu.PrefetchScalarGridSpec(
            num_scalar_prefetch=0,
            grid=(B, Sq // tq, Sk // tk),
            in_specs=[
                pl.BlockSpec((1, n_heads, tq, d_k), lambda b, qi, ki: (b, qb, qi, 0)),
                pl.BlockSpec((1, n_heads, tk, d_k), lambda b, qi, ki: (b, kb, ki, 0)),
                pl.BlockSpec((1, n_heads, tk, d_v), lambda b, qi, ki: (b, vb, ki, 0)),
            ],
            out_specs=pl.BlockSpec((1, n_heads, tq, d_v), lambda b, qi, ki: (b, 0, qi, 0)),
            scratch_shapes=[
                pltpu.VMEM((n_heads, tq, 1), jnp.float32),     # running max
                pltpu.VMEM((n_heads, tq, 1), jnp.float32),     # running denom
                pltpu.VMEM((n_heads, tq, d_v), jnp.float32),   # accumulator
            ],
        ),
        compiler_params=pltpu.CompilerParams(
            dimension_semantics=("parallel", "parallel", "arbitrary")),
    )(qh, kh, vh)


# ----------------------------------------------------------------------------
# Kernel 2b (optional): attention that also materializes the probs (return_attn=True).
# ----------------------------------------------------------------------------
def _attn_probs_kernel(q_ref, k_ref, v_ref, z_ref, a_ref):
    q = q_ref[0]                                               # [H, tq, dk] (pre-scaled)
    k = k_ref[0]                                               # [H, Sk, dk]
    v = v_ref[0]                                               # [H, Sk, dv]
    s = lax.dot_general(q, k, (((2,), (2,)), ((0,), (0,))),
                        preferred_element_type=jnp.float32)    # [H, tq, Sk]
    m = jnp.max(s, axis=-1, keepdims=True)
    e = jnp.exp(s - m)
    attn = e * pl.reciprocal(jnp.sum(e, axis=-1, keepdims=True), approx=True)
    z = lax.dot_general(attn.astype(v.dtype), v, (((2,), (1,)), ((0,), (0,))),
                        preferred_element_type=jnp.float32)    # [H, tq, dv]
    a_ref[0] = attn.astype(a_ref.dtype)
    z_ref[0] = z.astype(z_ref.dtype)


def attention_with_probs(qh, kh, vh, *, n_heads, d_k, d_v, head_blocks):
    B = qh.shape[0]
    Sq = qh.shape[2]
    Sk = kh.shape[2]
    tq = _pick_tile(Sq, 256)
    qb, kb, vb = head_blocks
    return pl.pallas_call(
        _attn_probs_kernel,
        out_shape=(
            jax.ShapeDtypeStruct((B, n_heads, Sq, d_v), qh.dtype),
            jax.ShapeDtypeStruct((B, n_heads, Sq, Sk), qh.dtype),
        ),
        grid_spec=pltpu.PrefetchScalarGridSpec(
            num_scalar_prefetch=0,
            grid=(B, Sq // tq),
            in_specs=[
                pl.BlockSpec((1, n_heads, tq, d_k), lambda b, qi: (b, qb, qi, 0)),
                pl.BlockSpec((1, n_heads, Sk, d_k), lambda b, qi: (b, kb, 0, 0)),
                pl.BlockSpec((1, n_heads, Sk, d_v), lambda b, qi: (b, vb, 0, 0)),
            ],
            out_specs=[
                pl.BlockSpec((1, n_heads, tq, d_v), lambda b, qi: (b, 0, qi, 0)),
                pl.BlockSpec((1, n_heads, tq, Sk), lambda b, qi: (b, 0, qi, 0)),
            ],
        ),
        compiler_params=pltpu.CompilerParams(
            dimension_semantics=("parallel", "parallel")),
    )(qh, kh, vh)


# ----------------------------------------------------------------------------
# Kernel 3: fc (concat heads as per-head matmul sum) + residual + LayerNorm.
# ----------------------------------------------------------------------------
def _fc_residual_ln_kernel(z_ref, w_ref, res_ref, g_ref, b_ref, o_ref, *, eps, n_heads):
    z = z_ref[0]                                               # [H, tq, dv]
    # concat(z) @ w_fc  ==  sum_h  z[h] @ w_fc[h]   (keeps z in head-major layout)
    y = jnp.dot(z[0], w_ref[0], preferred_element_type=jnp.float32)
    for h in range(1, n_heads):
        y = y + jnp.dot(z[h], w_ref[h], preferred_element_type=jnp.float32)
    y = y + res_ref[0].astype(jnp.float32)                     # dropout == identity (eval)
    mean = jnp.mean(y, axis=-1, keepdims=True)
    centered = y - mean
    var = jnp.mean(centered * centered, axis=-1, keepdims=True)  # biased variance (torch LN)
    inv = lax.rsqrt(var + eps)
    o_ref[0] = (centered * inv * g_ref[...] + b_ref[...]).astype(o_ref.dtype)


def fc_residual_layernorm(z, w_fc_heads, residual, gamma2d, beta2d, *, eps=1e-6):
    """z: [B,H,Sq,dv]; w_fc_heads: [H,dv,d_model]; residual: [B,Sq,d_model]; gamma/beta: [1,d_model]."""
    B, H, Sq, dv = z.shape
    d_model = w_fc_heads.shape[2]
    tq = _pick_tile(Sq, 256)
    kernel = functools.partial(_fc_residual_ln_kernel, eps=eps, n_heads=H)
    return pl.pallas_call(
        kernel,
        out_shape=jax.ShapeDtypeStruct((B, Sq, d_model), residual.dtype),
        grid_spec=pltpu.PrefetchScalarGridSpec(
            num_scalar_prefetch=0,
            grid=(B, Sq // tq),
            in_specs=[
                pl.BlockSpec((1, H, tq, dv), lambda b, s: (b, 0, s, 0)),
                pl.BlockSpec((H, dv, d_model), lambda b, s: (0, 0, 0)),
                pl.BlockSpec((1, tq, d_model), lambda b, s: (b, s, 0)),
                pl.BlockSpec((1, d_model), lambda b, s: (0, 0)),
                pl.BlockSpec((1, d_model), lambda b, s: (0, 0)),
            ],
            out_specs=pl.BlockSpec((1, tq, d_model), lambda b, s: (b, s, 0)),
        ),
        compiler_params=pltpu.CompilerParams(
            dimension_semantics=("parallel", "parallel")),
    )(z, w_fc_heads, residual, gamma2d, beta2d)


# ----------------------------------------------------------------------------
# Full module wrapper
# ----------------------------------------------------------------------------
def init_params(key, n_heads, d_model, d_k, d_v):
    k1, k2, k3, k4 = jax.random.split(key, 4)

    # stored as [in_features, out_features] so y = x @ W (matches nn.Linear's x @ W^T)
    def u(k, shape, fan_in):
        s = 1.0 / jnp.sqrt(fan_in)
        return jax.random.uniform(k, shape, jnp.float32, -s, s)

    return {
        "w_q": u(k1, (d_model, n_heads * d_k), d_model),
        "w_k": u(k2, (d_model, n_heads * d_k), d_model),
        "w_v": u(k3, (d_model, n_heads * d_v), d_model),
        "w_fc": u(k4, (n_heads * d_v, d_model), n_heads * d_v),
        "ln_gamma": jnp.ones((d_model,), jnp.float32),
        "ln_beta": jnp.zeros((d_model,), jnp.float32),
    }


def multi_head_attention(params, q, k, v, n_heads, d_k, d_v, mask=None,
                         return_attn=False, compute_dtype=None):
    """Forward pass.  Returns (out [B,Sq,d_model], attn [B,H,Sq,Sk] or None)."""
    assert mask is None, "TODO(synk): mask path not implemented"
    B, Sq, d_model = q.shape
    residual = q
    scale_inv = 1.0 / (float(d_k) ** 0.5)

    # must be checked before any casting (identity-based self-attention detection)
    self_attn = (q is k) and (k is v) and (d_k == d_v)

    # fold the 1/sqrt(d_k) score scale into w_q (one-time, fp32) — removes per-step
    # q scaling from the attention kernels entirely.
    w_q = params["w_q"] * scale_inv
    w_k, w_v, w_fc = params["w_k"], params["w_v"], params["w_fc"]
    if compute_dtype is not None:                  # e.g. bf16 operands for v6e/v7x MXU peak
        q, k, v = q.astype(compute_dtype), k.astype(compute_dtype), v.astype(compute_dtype)
        residual = residual.astype(compute_dtype)
        w_q, w_k, w_v, w_fc = (w.astype(compute_dtype) for w in (w_q, w_k, w_v, w_fc))

    # per-head weight stacks [H, D, d]  (tiny, one-time host reshape of the weights)
    wq_h = w_q.reshape(d_model, n_heads, d_k).transpose(1, 0, 2)
    wk_h = w_k.reshape(d_model, n_heads, d_k).transpose(1, 0, 2)
    wv_h = w_v.reshape(d_model, n_heads, d_v).transpose(1, 0, 2)

    if self_attn:
        # fused QKV projection: activation read once; attention BlockSpecs pick the
        # q/k/v head ranges (block offsets 0, H, 2H) out of the fused output.
        w_all = jnp.concatenate([wq_h, wk_h, wv_h], axis=0)       # [3H, D, dk]
        qkv = head_projection(q, w_all)                           # [B, 3H, Sq, dk]
        qh = kh = vh = qkv
        head_blocks = (0, 1, 2)                                   # in units of n_heads
    else:
        qh = head_projection(q, wq_h)                             # [B, H, Sq, dk]
        kh = head_projection(k, wk_h)                             # [B, H, Sk, dk]
        vh = head_projection(v, wv_h)                             # [B, H, Sk, dv]
        head_blocks = (0, 0, 0)

    if return_attn:
        z, attn = attention_with_probs(qh, kh, vh, n_heads=n_heads, d_k=d_k, d_v=d_v,
                                       head_blocks=head_blocks)
    else:
        z = flash_attention(qh, kh, vh, n_heads=n_heads, d_k=d_k, d_v=d_v,
                            head_blocks=head_blocks)
        attn = None

    w_fc_h = w_fc.reshape(n_heads, d_v, d_model)                  # free reshape
    out = fc_residual_layernorm(z, w_fc_h, residual,
                                params["ln_gamma"].reshape(1, d_model),
                                params["ln_beta"].reshape(1, d_model), eps=1e-6)
    return out, attn


if __name__ == "__main__":
    # Small shapes consistent with the module: batch=2, seq=8, d_model=32, 4 heads of dim 8.
    B, S, D = 2, 8, 32
    H, DK, DV = 4, 8, 8

    key = jax.random.PRNGKey(0)
    kp, kq, kk, kv = jax.random.split(key, 4)
    params = init_params(kp, H, D, DK, DV)

    q = jax.random.normal(kq, (B, S, D), jnp.float32)
    k = jax.random.normal(kk, (B, S, D), jnp.float32)
    v = jax.random.normal(kv, (B, S, D), jnp.float32)

    def ref_mha(params, q, k, v):
        b, sq, d = q.shape
        sk = k.shape[1]
        qp = (q.reshape(b * sq, d) @ params["w_q"]).reshape(b, sq, H, DK).transpose(0, 2, 1, 3)
        kp_ = (k.reshape(b * sk, d) @ params["w_k"]).reshape(b, sk, H, DK).transpose(0, 2, 1, 3)
        vp = (v.reshape(b * sk, d) @ params["w_v"]).reshape(b, sk, H, DV).transpose(0, 2, 1, 3)
        s = jnp.einsum("bhqd,bhkd->bhqk", qp, kp_) / (DK ** 0.5)
        a = jax.nn.softmax(s, axis=-1)
        z = jnp.einsum("bhqk,bhkd->bhqd", a, vp)
        zc = z.transpose(0, 2, 1, 3).reshape(b, sq, H * DV)
        y = zc @ params["w_fc"] + q
        mu = y.mean(-1, keepdims=True)
        var = ((y - mu) ** 2).mean(-1, keepdims=True)
        yn = (y - mu) / jnp.sqrt(var + 1e-6) * params["ln_gamma"] + params["ln_beta"]
        return yn, a

    # 1) cross-attention path (distinct q/k/v), attention probs requested
    out1, attn1 = multi_head_attention(params, q, k, v, H, DK, DV, return_attn=True)
    # 2) self-attention path: fused QKV projection + flash attention (no probs)
    out2, attn2 = multi_head_attention(params, q, q, q, H, DK, DV)
    # 3) bf16 operand path (v6e/v7x MXU) — smoke test
    out3, _ = multi_head_attention(params, q, q, q, H, DK, DV, compute_dtype=jnp.bfloat16)
    jax.block_until_ready((out1, attn1, out2, out3))

    out1_ref, attn1_ref = ref_mha(params, q, k, v)
    out2_ref, _ = ref_mha(params, q, q, q)

    assert attn2 is None
    assert jnp.allclose(out1, out1_ref, atol=1e-2, rtol=1e-2), "cross-attn output mismatch"
    assert jnp.allclose(attn1, attn1_ref, atol=1e-2, rtol=1e-2), "attention probs mismatch"
    assert jnp.allclose(out2, out2_ref, atol=1e-2, rtol=1e-2), "self-attn (flash) output mismatch"
    assert bool(jnp.isfinite(out3.astype(jnp.float32)).all()), "bf16 path produced non-finite values"

    print("KERNEL_OK")
</pallas_src>

<mosaic_0001>
module attributes {stable_mosaic.version = 11 : i64} {
  func.func @_proj_kernel(%arg0: i32, %arg1: i32, %arg2: i32, %arg3: i32, %arg4: memref<1x8x32xf32, #tpu.memory_space<vmem>>, %arg5: memref<4x32x8xf32, #tpu.memory_space<vmem>>, %arg6: memref<1x4x8x8xf32, #tpu.memory_space<vmem>>, %arg7: memref<4x8x8xf32, #tpu.memory_space<vmem>>) attributes {dimension_semantics = [#tpu.dimension_semantics<parallel>, #tpu.dimension_semantics<parallel>, #tpu.dimension_semantics<parallel>, #tpu.dimension_semantics<arbitrary>], iteration_bounds = array<i64: 2, 1, 1, 1>, scalar_prefetch = 0 : i64, scratch_operands = 1 : i64, tpu.core_type = #tpu.core_type<tc>, window_params = [{transform_indices = @transform_0, window_bounds = array<i64: 1, 8, 32>}, {transform_indices = @transform_1, window_bounds = array<i64: 4, 32, 8>}, {transform_indices = @transform_2, window_bounds = array<i64: 1, 4, 8, 8>}]} {
    %c0_i32 = arith.constant 0 : i32
    %0 = arith.cmpi eq, %arg3, %c0_i32 : i32
    %1 = arith.extui %0 : i1 to i32
    %c0_i32_0 = arith.constant 0 : i32
    %2 = arith.cmpi ne, %1, %c0_i32_0 : i32
    scf.if %2 {
      %cst_41 = arith.constant 0.000000e+00 : f32
      %44 = vector.broadcast %cst_41 : f32 to vector<4x8x8xf32>
      %c0_42 = arith.constant 0 : index
      %c0_43 = arith.constant 0 : index
      %c0_44 = arith.constant 0 : index
      %45 = vector.load %arg7[%c0_42, %c0_43, %c0_44] : memref<4x8x8xf32, #tpu.memory_space<vmem>>, vector<4x8x8xf32>
      tpu.vector_store %arg7[%c0_42, %c0_43, %c0_44], %44 {strides = array<i32>} : memref<4x8x8xf32, #tpu.memory_space<vmem>>, vector<4x8x8xf32>,
    } else {
    }
    %c0 = arith.constant 0 : index
    %c0_1 = arith.constant 0 : index
    %c0_2 = arith.constant 0 : index
    %3 = vector.load %arg4[%c0, %c0_1, %c0_2] : memref<1x8x32xf32, #tpu.memory_space<vmem>>, vector<1x8x32xf32>
    %4 = vector.shape_cast %3 : vector<1x8x32xf32> to vector<8x32xf32>
    %c0_3 = arith.constant 0 : index
    %c0_4 = arith.constant 0 : index
    %c0_5 = arith.constant 0 : index
    %5 = vector.load %arg7[%c0_3, %c0_4, %c0_5] : memref<4x8x8xf32, #tpu.memory_space<vmem>>, vector<1x8x8xf32>
    %6 = vector.shape_cast %5 : vector<1x8x8xf32> to vector<8x8xf32>
    %c0_6 = arith.constant 0 : index
    %c0_7 = arith.constant 0 : index
    %c0_8 = arith.constant 0 : index
    %7 = vector.load %arg5[%c0_6, %c0_7, %c0_8] : memref<4x32x8xf32, #tpu.memory_space<vmem>>, vector<1x32x8xf32>
    %8 = vector.shape_cast %7 : vector<1x32x8xf32> to vector<32x8xf32>
    %cst = arith.constant dense<0.000000e+00> : vector<8x8xf32>
    %9 = tpu.matmul %4, %8, %cst {dimension_numbers = #tpu.dot_dimension_numbers<[1], [0], [0], [1], [0, 0, 1, 1], [], []>} : vector<8x32xf32>, vector<32x8xf32>, vector<8x8xf32> -> vector<8x8xf32>
    %10 = arith.addf %6, %9 : vector<8x8xf32>
    %c0_9 = arith.constant 0 : index
    %c0_10 = arith.constant 0 : index
    %c0_11 = arith.constant 0 : index
    %11 = vector.load %arg7[%c0_9, %c0_10, %c0_11] : memref<4x8x8xf32, #tpu.memory_space<vmem>>, vector<1x8x8xf32>
    %12 = vector.shape_cast %11 : vector<1x8x8xf32> to vector<8x8xf32>
    %13 = vector.shape_cast %10 : vector<8x8xf32> to vector<1x8x8xf32>
    tpu.vector_store %arg7[%c0_9, %c0_10, %c0_11], %13 {strides = array<i32>} : memref<4x8x8xf32, #tpu.memory_space<vmem>>, vector<1x8x8xf32>,
    %c1 = arith.constant 1 : index
    %c0_12 = arith.constant 0 : index
    %c0_13 = arith.constant 0 : index
    %14 = vector.load %arg7[%c1, %c0_12, %c0_13] : memref<4x8x8xf32, #tpu.memory_space<vmem>>, vector<1x8x8xf32>
    %15 = vector.shape_cast %14 : vector<1x8x8xf32> to vector<8x8xf32>
    %c1_14 = arith.constant 1 : index
    %c0_15 = arith.constant 0 : index
    %c0_16 = arith.constant 0 : index
    %16 = vector.load %arg5[%c1_14, %c0_15, %c0_16] : memref<4x32x8xf32, #tpu.memory_space<vmem>>, vector<1x32x8xf32>
    %17 = vector.shape_cast %16 : vector<1x32x8xf32> to vector<32x8xf32>
    %cst_17 = arith.constant dense<0.000000e+00> : vector<8x8xf32>
    %18 = tpu.matmul %4, %17, %cst_17 {dimension_numbers = #tpu.dot_dimension_numbers<[1], [0], [0], [1], [0, 0, 1, 1], [], []>} : vector<8x32xf32>, vector<32x8xf32>, vector<8x8xf32> -> vector<8x8xf32>
    %19 = arith.addf %15, %18 : vector<8x8xf32>
    %c1_18 = arith.constant 1 : index
    %c0_19 = arith.constant 0 : index
    %c0_20 = arith.constant 0 : index
    %20 = vector.load %arg7[%c1_18, %c0_19, %c0_20] : memref<4x8x8xf32, #tpu.memory_space<vmem>>, vector<1x8x8xf32>
    %21 = vector.shape_cast %20 : vector<1x8x8xf32> to vector<8x8xf32>
    %22 = vector.shape_cast %19 : vector<8x8xf32> to vector<1x8x8xf32>
    tpu.vector_store %arg7[%c1_18, %c0_19, %c0_20], %22 {strides = array<i32>} : memref<4x8x8xf32, #tpu.memory_space<vmem>>, vector<1x8x8xf32>,
    %c2 = arith.constant 2 : index
    %c0_21 = arith.constant 0 : index
    %c0_22 = arith.constant 0 : index
    %23 = vector.load %arg7[%c2, %c0_21, %c0_22] : memref<4x8x8xf32, #tpu.memory_space<vmem>>, vector<1x8x8xf32>
    %24 = vector.shape_cast %23 : vector<1x8x8xf32> to vector<8x8xf32>
    %c2_23 = arith.constant 2 : index
    %c0_24 = arith.constant 0 : index
    %c0_25 = arith.constant 0 : index
    %25 = vector.load %arg5[%c2_23, %c0_24, %c0_25] : memref<4x32x8xf32, #tpu.memory_space<vmem>>, vector<1x32x8xf32>
    %26 = vector.shape_cast %25 : vector<1x32x8xf32> to vector<32x8xf32>
    %cst_26 = arith.constant dense<0.000000e+00> : vector<8x8xf32>
    %27 = tpu.matmul %4, %26, %cst_26 {dimension_numbers = #tpu.dot_dimension_numbers<[1], [0], [0], [1], [0, 0, 1, 1], [], []>} : vector<8x32xf32>, vector<32x8xf32>, vector<8x8xf32> -> vector<8x8xf32>
    %28 = arith.addf %24, %27 : vector<8x8xf32>
    %c2_27 = arith.constant 2 : index
    %c0_28 = arith.constant 0 : index
    %c0_29 = arith.constant 0 : index
    %29 = vector.load %arg7[%c2_27, %c0_28, %c0_29] : memref<4x8x8xf32, #tpu.memory_space<vmem>>, vector<1x8x8xf32>
    %30 = vector.shape_cast %29 : vector<1x8x8xf32> to vector<8x8xf32>
    %31 = vector.shape_cast %28 : vector<8x8xf32> to vector<1x8x8xf32>
    tpu.vector_store %arg7[%c2_27, %c0_28, %c0_29], %31 {strides = array<i32>} : memref<4x8x8xf32, #tpu.memory_space<vmem>>, vector<1x8x8xf32>,
    %c3 = arith.constant 3 : index
    %c0_30 = arith.constant 0 : index
    %c0_31 = arith.constant 0 : index
    %32 = vector.load %arg7[%c3, %c0_30, %c0_31] : memref<4x8x8xf32, #tpu.memory_space<vmem>>, vector<1x8x8xf32>
    %33 = vector.shape_cast %32 : vector<1x8x8xf32> to vector<8x8xf32>
    %c3_32 = arith.constant 3 : index
    %c0_33 = arith.constant 0 : index
    %c0_34 = arith.constant 0 : index
    %34 = vector.load %arg5[%c3_32, %c0_33, %c0_34] : memref<4x32x8xf32, #tpu.memory_space<vmem>>, vector<1x32x8xf32>
    %35 = vector.shape_cast %34 : vector<1x32x8xf32> to vector<32x8xf32>
    %cst_35 = arith.constant dense<0.000000e+00> : vector<8x8xf32>
    %36 = tpu.matmul %4, %35, %cst_35 {dimension_numbers = #tpu.dot_dimension_numbers<[1], [0], [0], [1], [0, 0, 1, 1], [], []>} : vector<8x32xf32>, vector<32x8xf32>, vector<8x8xf32> -> vector<8x8xf32>
    %37 = arith.addf %33, %36 : vector<8x8xf32>
    %c3_36 = arith.constant 3 : index
    %c0_37 = arith.constant 0 : index
    %c0_38 = arith.constant 0 : index
    %38 = vector.load %arg7[%c3_36, %c0_37, %c0_38] : memref<4x8x8xf32, #tpu.memory_space<vmem>>, vector<1x8x8xf32>
    %39 = vector.shape_cast %38 : vector<1x8x8xf32> to vector<8x8xf32>
    %40 = vector.shape_cast %37 : vector<8x8xf32> to vector<1x8x8xf32>
    tpu.vector_store %arg7[%c3_36, %c0_37, %c0_38], %40 {strides = array<i32>} : memref<4x8x8xf32, #tpu.memory_space<vmem>>, vector<1x8x8xf32>,
    %c0_i32_39 = arith.constant 0 : i32
    %41 = arith.cmpi eq, %arg3, %c0_i32_39 : i32
    %42 = arith.extui %41 : i1 to i32
    %c0_i32_40 = arith.constant 0 : i32
    %43 = arith.cmpi ne, %42, %c0_i32_40 : i32
    scf.if %43 {
      %c0_41 = arith.constant 0 : index
      %c0_42 = arith.constant 0 : index
      %c0_43 = arith.constant 0 : index
      %44 = vector.load %arg7[%c0_41, %c0_42, %c0_43] : memref<4x8x8xf32, #tpu.memory_space<vmem>>, vector<4x8x8xf32>
      %c0_44 = arith.constant 0 : index
      %c0_45 = arith.constant 0 : index
      %c0_46 = arith.constant 0 : index
      %c0_47 = arith.constant 0 : index
      %45 = vector.load %arg6[%c0_44, %c0_45, %c0_46, %c0_47] : memref<1x4x8x8xf32, #tpu.memory_space<vmem>>, vector<1x4x8x8xf32>
      %46 = vector.shape_cast %45 : vector<1x4x8x8xf32> to vector<4x8x8xf32>
      %47 = vector.shape_cast %44 : vector<4x8x8xf32> to vector<1x4x8x8xf32>
      tpu.vector_store %arg6[%c0_44, %c0_45, %c0_46, %c0_47], %47 {strides = array<i32>} : memref<1x4x8x8xf32, #tpu.memory_space<vmem>>, vector<1x4x8x8xf32>,
    } else {
    }
    return
  }
  func.func @transform_0(%arg0: i32, %arg1: i32, %arg2: i32, %arg3: i32) -> (i32, i32, i32) {
    %c0_i32 = arith.constant 0 : i32
    return %arg0, %arg1, %arg3 : i32, i32, i32
  }
  func.func @transform_1(%arg0: i32, %arg1: i32, %arg2: i32, %arg3: i32) -> (i32, i32, i32) {
    %c0_i32 = arith.constant 0 : i32
    %c0_i32_0 = arith.constant 0 : i32
    return %arg2, %arg3, %c0_i32 : i32, i32, i32
  }
  func.func @transform_2(%arg0: i32, %arg1: i32, %arg2: i32, %arg3: i32) -> (i32, i32, i32, i32) {
    %c0_i32 = arith.constant 0 : i32
    %c0_i32_0 = arith.constant 0 : i32
    return %arg0, %arg2, %arg1, %c0_i32 : i32, i32, i32, i32
  }
}

</mosaic_0001>

<llo_original>
// kernel: tpu_custom_call.1
$region0: #{tpu_custom_call.1}
  #allocation0 [shape = 'u32[]', space=smem, size = 0x4, offset = 0x4, fixed_abs, tag = 'smem constant byte address 0x4 - core index']
  #allocation1 [shape = 'u32[144,128]{1,0:T(1,128)}', space=vmem, size = 0x12000, scoped, tag = 'internal scratch']
  #allocation2 [shape = 'f32[4,8,8]{2,1,0:T(8,128)}', space=vmem, size = 0x4000, scoped, tag = 'scratch operand']
  %s0 = inlined_call_operand.vmem [shape: f32[2,8,32], index: 0, kind: input, shape index: {}]
  %s1 = inlined_call_operand.vmem [shape: f32[4,32,8], index: 1, kind: input, shape index: {}]
  %s2 = inlined_call_operand.hbm [shape: f32[2,4,8,8], index: 2, kind: output, shape index: {}]
  %s3 = sld [smem:[#allocation0]]
  $region49: #{tpu_custom_call.1} parent=0
    _
  %s5 = ssub.s32 1, %s3
  %s6 = scalar_select 0, %s5, %s3
  $region1: #{tpu_custom_call.1} parent=0
    #allocation3 [shape = 'u8[32768]{0}', space=vmem, size = 0x8000, scoped, tag = 'output window, operand 0']
    #allocation4 [shape = 's32[2]{0}', space=sflag, size = 0x8, scoped, tag = 'scoped memory for tpu_custom_call.1']
    %7 = vsyncpa [#allocation4], 0
    %s8 = scalar_lea.sflag [#allocation4], 1
    %9 = vsyncpa %s8, 0
    loop: start=0, step=1, limit=4
    $region2: #{tpu_custom_call.1} parent=1 // loop_pre_header
      _
    $region3: #{tpu_custom_call.1} parent=1 // loop_header
      %s11 = sphi 0, %s15
      %p12 = scmp.ge.s32.totalorder %s11, 4
      %s18 = sphi 0, %s44
      %s19 = sphi 0, %s40
      %s20 = sphi 0, %s36
      %s21 = sphi 0, %s32
      %s22 = sphi 0, %s18
      %s23 = sphi 0, %s19
      %s24 = sphi 0, %s20
      %s25 = sphi 0, %s21
      %s26 = sphi 0, %s22
      %s27 = sphi 0, %s23
      %s28 = sphi 0, %s24
      %s29 = sphi 0, %s25
      %s51 = sphi 0, %s53
      %s54 = sphi 0, %s51
      %s55 = sphi 0, %s54
      %s71 = sphi 0, %s55
      %s79 = sphi 0, %s81
      %s82 = sphi 0, %s79
      %s83 = sphi 0, %s82
      %s99 = sphi 0, %s83
      %s109 = sphi 0, %s111
      %s112 = sphi 0, %s109
      %s113 = sphi 0, %s112
      %s129 = sphi 0, %s113
    $region4: #{tpu_custom_call.1} parent=1 // loop_header_branch
      %14 = sbr.rel (%p12) target = $region8
    $region5: #{tpu_custom_call.1} parent=1 // loop_body
      %s16 = ssub.s32 %s11, 1
      %s17 = ssub.s32 %s11, 2
      %s30 = sadd.s32 1, %s21
      %p31 = scmp.ge.s32.totalorder %s30, 1
      %s32 = scalar_select %p31, 0, %s30
      %s33 = sadd.s32 1, %s20
      %s34 = scalar_select %p31, %s33, %s20
      %p35 = scmp.ge.s32.totalorder %s34, 1
      %s36 = scalar_select %p35, 0, %s34
      %s37 = sadd.s32 1, %s19
      %s38 = scalar_select %p35, %s37, %s19
      %p39 = scmp.ge.s32.totalorder %s38, 1
      %s40 = scalar_select %p39, 0, %s38
      %s41 = sadd.s32 1, %s18
      %s42 = scalar_select %p39, %s41, %s18
      %p43 = scmp.ge.s32.totalorder %s42, 2
      %s44 = scalar_select %p43, 0, %s42
      %s45 = ssub.s32 %s18, %s44
      %s46 = ssub.s32 %s19, %s40
      %s47 = sor.u32 %s45, %s46
      %s48 = ssub.s32 %s21, %s32
      %s49 = sor.u32 %s47, %s48
      %p50 = scmp.eq.s32.totalorder %s49, 0
      %s52 = sadd.s32 %s51, 1
      %s53 = scalar_select %p50, %s51, %s52
      %p56 = pneg %p50
      %p57 = scmp.eq.s32.totalorder %s11, 1
      %p58 = por %p56, %p57
      %p59 = scmp.ne.s32.totalorder %s51, %s54
      %p60 = scmp.eq.s32.totalorder %s11, 0
      %p61 = por %p59, %p60
      %p62 = scmp.ne.s32.totalorder %s51, %s54
      %p63 = scmp.eq.s32.totalorder %s16, 1
      %p64 = por %p62, %p63
      %p65 = scmp.ne.s32.totalorder %s54, %s55
      %p66 = scmp.eq.s32.totalorder %s16, 0
      %p67 = por %p65, %p66
      %p68 = scmp.ne.s32.totalorder %s54, %s55
      %p69 = scmp.eq.s32.totalorder %s17, 1
      %p70 = por %p68, %p69
      %p72 = scmp.ne.s32.totalorder %s55, %s71
      %p73 = scmp.eq.s32.totalorder %s17, 0
      %p74 = por %p72, %p73
      %s75 = ssub.s32 %s20, %s36
      %s76 = ssub.s32 %s21, %s32
      %s77 = sor.u32 %s75, %s76
      %p78 = scmp.eq.s32.totalorder %s77, 0
      %s80 = sadd.s32 %s79, 1
      %s81 = scalar_select %p78, %s79, %s80
      %p84 = pneg %p78
      %p85 = scmp.eq.s32.totalorder %s11, 1
      %p86 = por %p84, %p85
      %p87 = scmp.ne.s32.totalorder %s79, %s82
      %p88 = scmp.eq.s32.totalorder %s11, 0
      %p89 = por %p87, %p88
      %p90 = scmp.ne.s32.totalorder %s79, %s82
      %p91 = scmp.eq.s32.totalorder %s16, 1
      %p92 = por %p90, %p91
      %p93 = scmp.ne.s32.totalorder %s82, %s83
      %p94 = scmp.eq.s32.totalorder %s16, 0
      %p95 = por %p93, %p94
      %p96 = scmp.ne.s32.totalorder %s82, %s83
      %p97 = scmp.eq.s32.totalorder %s17, 1
      %p98 = por %p96, %p97
      %p100 = scmp.ne.s32.totalorder %s83, %s99
      %p101 = scmp.eq.s32.totalorder %s17, 0
      %p102 = por %p100, %p101
      %s103 = ssub.s32 %s18, %s44
      %s104 = ssub.s32 %s20, %s36
      %s105 = sor.u32 %s103, %s104
      %s106 = ssub.s32 %s19, %s40
      %s107 = sor.u32 %s105, %s106
      %p108 = scmp.eq.s32.totalorder %s107, 0
      %s110 = sadd.s32 %s109, 1
      %s111 = scalar_select %p108, %s109, %s110
      %p114 = pneg %p108
      %p115 = scmp.eq.s32.totalorder %s11, 1
      %p116 = por %p114, %p115
      %p117 = scmp.ne.s32.totalorder %s109, %s112
      %p118 = scmp.eq.s32.totalorder %s11, 0
      %p119 = por %p117, %p118
      %p120 = scmp.ne.s32.totalorder %s109, %s112
      %p121 = scmp.eq.s32.totalorder %s16, 1
      %p122 = por %p120, %p121
      %p123 = scmp.ne.s32.totalorder %s112, %s113
      %p124 = scmp.eq.s32.totalorder %s16, 0
      %p125 = por %p123, %p124
      %p126 = scmp.ne.s32.totalorder %s112, %s113
      %p127 = scmp.eq.s32.totalorder %s17, 1
      %p128 = por %p126, %p127
      %p130 = scmp.ne.s32.totalorder %s113, %s129
      %p131 = scmp.eq.s32.totalorder %s17, 0
      %p132 = por %p130, %p131
      %p133 = scmp.le.s32.totalorder 1, %s11
      %p134 = scmp.lt.s32.totalorder %s11, 3
      %p135 = pnand %p133, %p134
      %p136 = pneg %p135
      // Predicated region
      $region9: #{tpu_custom_call.1} parent=5 // pred_check
        _
      $region10: #{tpu_custom_call.1} parent=5 // pred_check_branch
        %138 = sbr.rel (%p135) target = $region12
      $region11: #{tpu_custom_call.1} parent=5 // pred_region
        %s139 = ssub.s32 %s11, 1
        // Predicated region
        $region13: #{tpu_custom_call.1} parent=11 // pred_check
          %p140 = pneg %p95
        $region14: #{tpu_custom_call.1} parent=11 // pred_check_branch
          %142 = sbr.rel (%p140) target = $region16
        $region15: #{tpu_custom_call.1} parent=11 // pred_region
          %s143 = smul.u32 4, %s24
          %s144 = smul.u32 4, %s25
          %p145 = scmp.lt.s32.totalorder %s143, 3
          %s146 = scalar_select %p145, %s143, 3
          %p147 = scmp.lt.s32.totalorder %s144, 3
          %s148 = scalar_select %p147, %s144, 3
          %s149 = smul.addr %s146, 4
          %s150 = sadd.s32 %s148, %s149
          %s151 = smul.addr %s150, 8
          %s152 = scalar_lea.vmem %s1, %s151
          %s153 = smul.u32 4, %s24
          %s154 = smul.u32 4, %s25
        $region16: #{tpu_custom_call.1} parent=11 // pred_fallthru
          _
      $region12: #{tpu_custom_call.1} parent=5 // pred_fallthru
        _
      %p155 = scmp.lt.s32.totalorder %s11, 2
      // Predicated region
      $region17: #{tpu_custom_call.1} parent=5 // pred_check
        %p156 = pneg %p155
      $region18: #{tpu_custom_call.1} parent=5 // pred_check_branch
        %158 = sbr.rel (%p156) target = $region20
      $region19: #{tpu_custom_call.1} parent=5 // pred_region
        // Predicated region
        $region21: #{tpu_custom_call.1} parent=19 // pred_check
          %p159 = pneg %p61
        $region22: #{tpu_custom_call.1} parent=19 // pred_check_branch
          %161 = sbr.rel (%p159) target = $region24
        $region23: #{tpu_custom_call.1} parent=19 // pred_region
          %p162 = scmp.lt.s32.totalorder %s18, 1
          %s163 = scalar_select %p162, %s18, 1
          %p164 = scmp.lt.s32.totalorder %s19, 0
          %s165 = scalar_select %p164, %s19, 0
          %p166 = scmp.lt.s32.totalorder %s21, 0
          %s167 = scalar_select %p166, %s21, 0
          %s168 = sadd.s32 %s167, %s165
          %s169 = sadd.s32 %s168, %s163
          %s170 = smul.addr %s169, 8
          %s171 = scalar_lea.vmem %s0, %s170
        $region24: #{tpu_custom_call.1} parent=19 // pred_fallthru
          _
      $region20: #{tpu_custom_call.1} parent=5 // pred_fallthru
        _
      %p172 = scmp.le.s32.totalorder 1, %s11
      %p173 = scmp.lt.s32.totalorder %s11, 3
      %p174 = pnand %p172, %p173
      %p175 = pneg %p174
      // Predicated region
      $region25: #{tpu_custom_call.1} parent=5 // pred_check
        _
      $region26: #{tpu_custom_call.1} parent=5 // pred_check_branch
        %177 = sbr.rel (%p174) target = $region28
      $region27: #{tpu_custom_call.1} parent=5 // pred_region
        %s178 = ssub.s32 %s11, 1
        %p179 = scmp.lt.s32.totalorder %s22, 1
        %s180 = scalar_select %p179, %s22, 1
        %p181 = scmp.lt.s32.totalorder %s23, 0
        %s182 = scalar_select %p181, %s23, 0
        %p183 = scmp.lt.s32.totalorder %s25, 0
        %s184 = scalar_select %p183, %s25, 0
        %s185 = sadd.s32 %s184, %s182
        %s186 = sadd.s32 %s185, %s180
        %s187 = smul.addr %s186, 8
        %s188 = scalar_lea.vmem %s0, %s187
        %p189 = pneg %p67
        %p190 = pneg %p64
        %s191 = smul.u32 4, %s24
        %s192 = smul.u32 4, %s25
        %p193 = scmp.lt.s32.totalorder %s191, 3
        %s194 = scalar_select %p193, %s191, 3
        %p195 = scmp.lt.s32.totalorder %s192, 3
        %s196 = scalar_select %p195, %s192, 3
        %s197 = smul.addr %s194, 4
        %s198 = sadd.s32 %s196, %s197
        %s199 = smul.addr %s198, 8
        %s200 = scalar_lea.vmem %s1, %s199
        %p201 = pneg %p95
        %p202 = pneg %p92
        %p203 = pneg %p125
        %p204 = pneg %p122
        %s205 = sand.u32 %s112, 1
        %s206 = scalar_lea.sflag [#allocation4], %s205
        %s207 = sand.u32 %s112, 1
        %s208 = smul.addr %s207, 32
        %s209 = scalar_lea.vmem [#allocation3], %s208
        %p210 = scmp.lt.s32.totalorder %s22, 1
        %s211 = scalar_select %p210, %s22, 1
        %p212 = scmp.lt.s32.totalorder %s23, 0
        %s213 = scalar_select %p212, %s23, 0
        %p214 = scmp.lt.s32.totalorder %s25, 0
        %s215 = scalar_select %p214, %s25, 0
        %s216 = sadd.s32 %s215, %s213
        %s217 = sadd.s32 %s216, %s211
        %s218 = smul.addr %s217, 8
        %s219 = scalar_lea.vmem %s0, %s218
        %s220 = smul.u32 4, %s24
        %s221 = smul.u32 4, %s25
        %p222 = scmp.lt.s32.totalorder %s220, 3
        %s223 = scalar_select %p222, %s220, 3
        %p224 = scmp.lt.s32.totalorder %s221, 3
        %s225 = scalar_select %p224, %s221, 3
        %s226 = smul.addr %s223, 4
        %s227 = sadd.s32 %s225, %s226
        %s228 = smul.addr %s227, 8
        %s229 = scalar_lea.vmem %s1, %s228
        %s230 = smul.u32 4, %s24
        %s231 = smul.u32 4, %s25
        %s232 = smul.u32 4, %s24
        %p233 = scmp.eq.s32.totalorder %s25, 0
        // Predicated region
        $region29: #{tpu_custom_call.1} parent=27 // pred_check
          %p234 = pneg %p233
        $region30: #{tpu_custom_call.1} parent=27 // pred_check_branch
          %236 = sbr.rel (%p234) target = $region32
        $region31: #{tpu_custom_call.1} parent=27 // pred_region
          %vm237 = vcmask 64512
          %238 = vst.msk [vmem:[#allocation2] sm:$0xff] %vm237, 0.0
          %239 = vst.msk [vmem:[#allocation2 + $0x8] sm:$0xff] %vm237, 0.0
          %240 = vst.msk [vmem:[#allocation2 + $0x10] sm:$0xff] %vm237, 0.0
          %241 = vst.msk [vmem:[#allocation2 + $0x18] sm:$0xff] %vm237, 0.0
        $region32: #{tpu_custom_call.1} parent=27 // pred_fallthru
          _
        %v242 = vld [vmem:[%s219] sm:$0xff]
        %v243 = vld [vmem:[#allocation2] sm:$0xff]
        %v244 = vld [vmem:[%s229] sm:$0xff]
        %v245 = vld [vmem:[%s229 + $0x8] sm:$0xff]
        %v246 = vld [vmem:[%s229 + $0x10] sm:$0xff]
        %v247 = vld [vmem:[%s229 + $0x18] sm:$0xff]
        %vm248 = vcmask 261120
        %v250 = vsel %vm248, %v242, 0
        %252 = vmatprep.subr.mxu0 0.0
        %253 = vmatpush1.msra.mxu0 %v244
        %254 = vmatprep.subr.mxu0 0.0
        %255 = vmatpush1.msra.mxu0 %v245
        %256 = vmatprep.subr.mxu0 0.0
        %257 = vmatpush1.msra.mxu0 %v246
        %258 = vmatprep.subr.mxu0 0.0
        %259 = vmatpush1.msra.mxu0 %v247
        %260 = vmatprep.subr.mxu0 0.0
        %261 = vmatpush1.msra.mxu0 0.0
        %262 = vmatprep.subr.mxu0 0.0
        %263 = vmatpush1.msra.mxu0 0.0
        %264 = vmatprep.subr.mxu0 0.0
        %265 = vmatpush1.msra.mxu0 0.0
        %266 = vmatprep.subr.mxu0 0.0
        %267 = vmatpush1.msra.mxu0 0.0
        %268 = vmatprep.subr.mxu0 0.0
        %269 = vmatpush1.msra.mxu0 0.0
        %270 = vmatprep.subr.mxu0 0.0
        %271 = vmatpush1.msra.mxu0 0.0
        %272 = vmatprep.subr.mxu0 0.0
        %273 = vmatpush1.msra.mxu0 0.0
        %274 = vmatprep.subr.mxu0 0.0
        %275 = vmatpush1.msra.mxu0 0.0
        %276 = vmatprep.subr.mxu0 0.0
        %277 = vmatpush1.msra.mxu0 0.0
        %278 = vmatprep.subr.mxu0 0.0
        %279 = vmatpush1.msra.mxu0 0.0
        %280 = vmatprep.subr.mxu0 0.0
        %281 = vmatpush1.msra.mxu0 0.0
        %282 = vmatprep.subr.mxu0 0.0
        %283 = vmatpush1.msra.mxu0 0.0
        %284 = vmatprep.subr.mxu0 0.0
        %285 = vmatpush1.msra.mxu0 0.0
        %286 = vmatprep.subr.mxu0 0.0
        %287 = vmatpush1.msra.mxu0 0.0
        %288 = vmatprep.subr.mxu0 0.0
        %289 = vmatpush1.msra.mxu0 0.0
        %290 = vmatprep.subr.mxu0 0.0
        %291 = vmatpush1.msra.mxu0 0.0
        %292 = vmatprep.subr.mxu0 0.0
        %293 = vmatpush1.msra.mxu0 0.0
        %294 = vmatprep.subr.mxu0 0.0
        %295 = vmatpush1.msra.mxu0 0.0
        %296 = vmatprep.subr.mxu0 0.0
        %297 = vmatpush1.msra.mxu0 0.0
        %298 = vmatprep.subr.mxu0 0.0
        %299 = vmatpush1.msra.mxu0 0.0
        %300 = vmatprep.subr.mxu0 0.0
        %301 = vmatpush1.msra.mxu0 0.0
        %302 = vmatprep.subr.mxu0 0.0
        %303 = vmatpush1.msra.mxu0 0.0
        %304 = vmatprep.subr.mxu0 0.0
        %305 = vmatpush1.msra.mxu0 0.0
        %306 = vmatprep.subr.mxu0 0.0
        %307 = vmatpush1.msra.mxu0 0.0
        %308 = vmatprep.subr.mxu0 0.0
        %309 = vmatpush1.msra.mxu0 0.0
        %310 = vmatprep.subr.mxu0 0.0
        %311 = vmatpush1.msra.mxu0 0.0
        %312 = vmatprep.subr.mxu0 0.0
        %313 = vmatpush1.msra.mxu0 0.0
        %314 = vmatprep.subr.mxu0 0.0
        %315 = vmatpush1.msra.mxu0 0.0
        %316 = vmatprep.mubr.f32.mxu0 0.0
        %317 = vmatmul.mubr.f32.gmra.mrb[0].mxu0 %v250
        %v318 = vpop.f32.mrb[0].mxu0
        %v319 = vadd.f32 0.0, %v318
        %v320 = vpop.f32.mrb[0].mxu0
        %321 = vdwg.mxu0
        %v322 = vadd.f32 %v243, %v319
        %vm323 = vcmask 64512
        %324 = vst.msk [vmem:[#allocation2] sm:$0xff] %vm323, %v322
        %s325 = scalar_lea.vmem [#allocation2], 8
        %v326 = vld [vmem:[%s325] sm:$0xff]
        %s327 = scalar_lea.vmem %s229, 32
        %v328 = vld [vmem:[%s327] sm:$0xff]
        %v329 = vld [vmem:[%s327 + $0x8] sm:$0xff]
        %v330 = vld [vmem:[%s327 + $0x10] sm:$0xff]
        %v331 = vld [vmem:[%s327 + $0x18] sm:$0xff]
        %332 = vmatprep.subr.mxu0 0.0
        %333 = vmatpush1.msra.mxu0 %v328
        %334 = vmatprep.subr.mxu0 0.0
        %335 = vmatpush1.msra.mxu0 %v329
        %336 = vmatprep.subr.mxu0 0.0
        %337 = vmatpush1.msra.mxu0 %v330
        %338 = vmatprep.subr.mxu0 0.0
        %339 = vmatpush1.msra.mxu0 %v331
        %340 = vmatprep.subr.mxu0 0.0
        %341 = vmatpush1.msra.mxu0 0.0
        %342 = vmatprep.subr.mxu0 0.0
        %343 = vmatpush1.msra.mxu0 0.0
        %344 = vmatprep.subr.mxu0 0.0
        %345 = vmatpush1.msra.mxu0 0.0
        %346 = vmatprep.subr.mxu0 0.0
        %347 = vmatpush1.msra.mxu0 0.0
        %348 = vmatprep.subr.mxu0 0.0
        %349 = vmatpush1.msra.mxu0 0.0
        %350 = vmatprep.subr.mxu0 0.0
        %351 = vmatpush1.msra.mxu0 0.0
        %352 = vmatprep.subr.mxu0 0.0
        %353 = vmatpush1.msra.mxu0 0.0
        %354 = vmatprep.subr.mxu0 0.0
        %355 = vmatpush1.msra.mxu0 0.0
        %356 = vmatprep.subr.mxu0 0.0
        %357 = vmatpush1.msra.mxu0 0.0
        %358 = vmatprep.subr.mxu0 0.0
        %359 = vmatpush1.msra.mxu0 0.0
        %360 = vmatprep.subr.mxu0 0.0
        %361 = vmatpush1.msra.mxu0 0.0
        %362 = vmatprep.subr.mxu0 0.0
        %363 = vmatpush1.msra.mxu0 0.0
        %364 = vmatprep.subr.mxu0 0.0
        %365 = vmatpush1.msra.mxu0 0.0
        %366 = vmatprep.subr.mxu0 0.0
        %367 = vmatpush1.msra.mxu0 0.0
        %368 = vmatprep.subr.mxu0 0.0
        %369 = vmatpush1.msra.mxu0 0.0
        %370 = vmatprep.subr.mxu0 0.0
        %371 = vmatpush1.msra.mxu0 0.0
        %372 = vmatprep.subr.mxu0 0.0
        %373 = vmatpush1.msra.mxu0 0.0
        %374 = vmatprep.subr.mxu0 0.0
        %375 = vmatpush1.msra.mxu0 0.0
        %376 = vmatprep.subr.mxu0 0.0
        %377 = vmatpush1.msra.mxu0 0.0
        %378 = vmatprep.subr.mxu0 0.0
        %379 = vmatpush1.msra.mxu0 0.0
        %380 = vmatprep.subr.mxu0 0.0
        %381 = vmatpush1.msra.mxu0 0.0
        %382 = vmatprep.subr.mxu0 0.0
        %383 = vmatpush1.msra.mxu0 0.0
        %384 = vmatprep.subr.mxu0 0.0
        %385 = vmatpush1.msra.mxu0 0.0
        %386 = vmatprep.subr.mxu0 0.0
        %387 = vmatpush1.msra.mxu0 0.0
        %388 = vmatprep.subr.mxu0 0.0
        %389 = vmatpush1.msra.mxu0 0.0
        %390 = vmatprep.subr.mxu0 0.0
        %391 = vmatpush1.msra.mxu0 0.0
        %392 = vmatprep.subr.mxu0 0.0
        %393 = vmatpush1.msra.mxu0 0.0
        %394 = vmatprep.subr.mxu0 0.0
        %395 = vmatpush1.msra.mxu0 0.0
        %396 = vmatprep.mubr.f32.mxu0 0.0
        %397 = vmatmul.mubr.f32.gmra.mrb[0].mxu0 %v250
        %v398 = vpop.f32.mrb[0].mxu0
        %v399 = vadd.f32 0.0, %v398
        %v400 = vpop.f32.mrb[0].mxu0
        %401 = vdwg.mxu0
        %v402 = vadd.f32 %v326, %v399
        %403 = vst.msk [vmem:[%s325] sm:$0xff] %vm323, %v402
        %s404 = scalar_lea.vmem [#allocation2], 16
        %v405 = vld [vmem:[%s404] sm:$0xff]
        %s406 = scalar_lea.vmem %s229, 64
        %v407 = vld [vmem:[%s406] sm:$0xff]
        %v408 = vld [vmem:[%s406 + $0x8] sm:$0xff]
        %v409 = vld [vmem:[%s406 + $0x10] sm:$0xff]
        %v410 = vld [vmem:[%s406 + $0x18] sm:$0xff]
        %411 = vmatprep.subr.mxu0 0.0
        %412 = vmatpush1.msra.mxu0 %v407
        %413 = vmatprep.subr.mxu0 0.0
        %414 = vmatpush1.msra.mxu0 %v408
        %415 = vmatprep.subr.mxu0 0.0
        %416 = vmatpush1.msra.mxu0 %v409
        %417 = vmatprep.subr.mxu0 0.0
        %418 = vmatpush1.msra.mxu0 %v410
        %419 = vmatprep.subr.mxu0 0.0
        %420 = vmatpush1.msra.mxu0 0.0
        %421 = vmatprep.subr.mxu0 0.0
        %422 = vmatpush1.msra.mxu0 0.0
        %423 = vmatprep.subr.mxu0 0.0
        %424 = vmatpush1.msra.mxu0 0.0
        %425 = vmatprep.subr.mxu0 0.0
        %426 = vmatpush1.msra.mxu0 0.0
        %427 = vmatprep.subr.mxu0 0.0
        %428 = vmatpush1.msra.mxu0 0.0
        %429 = vmatprep.subr.mxu0 0.0
        %430 = vmatpush1.msra.mxu0 0.0
        %431 = vmatprep.subr.mxu0 0.0
        %432 = vmatpush1.msra.mxu0 0.0
        %433 = vmatprep.subr.mxu0 0.0
        %434 = vmatpush1.msra.mxu0 0.0
        %435 = vmatprep.subr.mxu0 0.0
        %436 = vmatpush1.msra.mxu0 0.0
        %437 = vmatprep.subr.mxu0 0.0
        %438 = vmatpush1.msra.mxu0 0.0
        %439 = vmatprep.subr.mxu0 0.0
        %440 = vmatpush1.msra.mxu0 0.0
        %441 = vmatprep.subr.mxu0 0.0
        %442 = vmatpush1.msra.mxu0 0.0
        %443 = vmatprep.subr.mxu0 0.0
        %444 = vmatpush1.msra.mxu0 0.0
        %445 = vmatprep.subr.mxu0 0.0
        %446 = vmatpush1.msra.mxu0 0.0
        %447 = vmatprep.subr.mxu0 0.0
        %448 = vmatpush1.msra.mxu0 0.0
        %449 = vmatprep.subr.mxu0 0.0
        %450 = vmatpush1.msra.mxu0 0.0
        %451 = vmatprep.subr.mxu0 0.0
        %452 = vmatpush1.msra.mxu0 0.0
        %453 = vmatprep.subr.mxu0 0.0
        %454 = vmatpush1.msra.mxu0 0.0
        %455 = vmatprep.subr.mxu0 0.0
        %456 = vmatpush1.msra.mxu0 0.0
        %457 = vmatprep.subr.mxu0 0.0
        %458 = vmatpush1.msra.mxu0 0.0
        %459 = vmatprep.subr.mxu0 0.0
        %460 = vmatpush1.msra.mxu0 0.0
        %461 = vmatprep.subr.mxu0 0.0
        %462 = vmatpush1.msra.mxu0 0.0
        %463 = vmatprep.subr.mxu0 0.0
        %464 = vmatpush1.msra.mxu0 0.0
        %465 = vmatprep.subr.mxu0 0.0
        %466 = vmatpush1.msra.mxu0 0.0
        %467 = vmatprep.subr.mxu0 0.0
        %468 = vmatpush1.msra.mxu0 0.0
        %469 = vmatprep.subr.mxu0 0.0
        %470 = vmatpush1.msra.mxu0 0.0
        %471 = vmatprep.subr.mxu0 0.0
        %472 = vmatpush1.msra.mxu0 0.0
        %473 = vmatprep.subr.mxu0 0.0
        %474 = vmatpush1.msra.mxu0 0.0
        %475 = vmatprep.mubr.f32.mxu0 0.0
        %476 = vmatmul.mubr.f32.gmra.mrb[0].mxu0 %v250
        %v477 = vpop.f32.mrb[0].mxu0
        %v478 = vadd.f32 0.0, %v477
        %v479 = vpop.f32.mrb[0].mxu0
        %480 = vdwg.mxu0
        %v481 = vadd.f32 %v405, %v478
        %482 = vst.msk [vmem:[%s404] sm:$0xff] %vm323, %v481
        %s483 = scalar_lea.vmem [#allocation2], 24
        %v484 = vld [vmem:[%s483] sm:$0xff]
        %s485 = scalar_lea.vmem %s229, 96
        %v486 = vld [vmem:[%s485] sm:$0xff]
        %v487 = vld [vmem:[%s485 + $0x8] sm:$0xff]
        %v488 = vld [vmem:[%s485 + $0x10] sm:$0xff]
        %v489 = vld [vmem:[%s485 + $0x18] sm:$0xff]
        %490 = vmatprep.subr.mxu0 0.0
        %491 = vmatpush1.msra.mxu0 %v486
        %492 = vmatprep.subr.mxu0 0.0
        %493 = vmatpush1.msra.mxu0 %v487
        %494 = vmatprep.subr.mxu0 0.0
        %495 = vmatpush1.msra.mxu0 %v488
        %496 = vmatprep.subr.mxu0 0.0
        %497 = vmatpush1.msra.mxu0 %v489
        %498 = vmatprep.subr.mxu0 0.0
        %499 = vmatpush1.msra.mxu0 0.0
        %500 = vmatprep.subr.mxu0 0.0
        %501 = vmatpush1.msra.mxu0 0.0
        %502 = vmatprep.subr.mxu0 0.0
        %503 = vmatpush1.msra.mxu0 0.0
        %504 = vmatprep.subr.mxu0 0.0
        %505 = vmatpush1.msra.mxu0 0.0
        %506 = vmatprep.subr.mxu0 0.0
        %507 = vmatpush1.msra.mxu0 0.0
        %508 = vmatprep.subr.mxu0 0.0
        %509 = vmatpush1.msra.mxu0 0.0
        %510 = vmatprep.subr.mxu0 0.0
        %511 = vmatpush1.msra.mxu0 0.0
        %512 = vmatprep.subr.mxu0 0.0
        %513 = vmatpush1.msra.mxu0 0.0
        %514 = vmatprep.subr.mxu0 0.0
        %515 = vmatpush1.msra.mxu0 0.0
        %516 = vmatprep.subr.mxu0 0.0
        %517 = vmatpush1.msra.mxu0 0.0
        %518 = vmatprep.subr.mxu0 0.0
        %519 = vmatpush1.msra.mxu0 0.0
        %520 = vmatprep.subr.mxu0 0.0
        %521 = vmatpush1.msra.mxu0 0.0
        %522 = vmatprep.subr.mxu0 0.0
        %523 = vmatpush1.msra.mxu0 0.0
        %524 = vmatprep.subr.mxu0 0.0
        %525 = vmatpush1.msra.mxu0 0.0
        %526 = vmatprep.subr.mxu0 0.0
        %527 = vmatpush1.msra.mxu0 0.0
        %528 = vmatprep.subr.mxu0 0.0
        %529 = vmatpush1.msra.mxu0 0.0
        %530 = vmatprep.subr.mxu0 0.0
        %531 = vmatpush1.msra.mxu0 0.0
        %532 = vmatprep.subr.mxu0 0.0
        %533 = vmatpush1.msra.mxu0 0.0
        %534 = vmatprep.subr.mxu0 0.0
        %535 = vmatpush1.msra.mxu0 0.0
        %536 = vmatprep.subr.mxu0 0.0
        %537 = vmatpush1.msra.mxu0 0.0
        %538 = vmatprep.subr.mxu0 0.0
        %539 = vmatpush1.msra.mxu0 0.0
        %540 = vmatprep.subr.mxu0 0.0
        %541 = vmatpush1.msra.mxu0 0.0
        %542 = vmatprep.subr.mxu0 0.0
        %543 = vmatpush1.msra.mxu0 0.0
        %544 = vmatprep.subr.mxu0 0.0
        %545 = vmatpush1.msra.mxu0 0.0
        %546 = vmatprep.subr.mxu0 0.0
        %547 = vmatpush1.msra.mxu0 0.0
        %548 = vmatprep.subr.mxu0 0.0
        %549 = vmatpush1.msra.mxu0 0.0
        %550 = vmatprep.subr.mxu0 0.0
        %551 = vmatpush1.msra.mxu0 0.0
        %552 = vmatprep.subr.mxu0 0.0
        %553 = vmatpush1.msra.mxu0 0.0
        %554 = vmatprep.mubr.f32.mxu0 0.0
        %555 = vmatmul.mubr.f32.gmra.mrb[0].mxu0 %v250
        %v556 = vpop.f32.mrb[0].mxu0
        %v557 = vadd.f32 0.0, %v556
        %v558 = vpop.f32.mrb[0].mxu0
        %559 = vdwg.mxu0
        %v560 = vadd.f32 %v484, %v557
        %561 = vst.msk [vmem:[%s483] sm:$0xff] %vm323, %v560
        // Predicated region
        $region33: #{tpu_custom_call.1} parent=27 // pred_check
          %p562 = pneg %p233
        $region34: #{tpu_custom_call.1} parent=27 // pred_check_branch
          %564 = sbr.rel (%p562) target = $region36
        $region35: #{tpu_custom_call.1} parent=27 // pred_region
          %v565 = vld [vmem:[#allocation2] sm:$0xff]
          %v566 = vld [vmem:[#allocation2 + $0x8] sm:$0xff]
          %v567 = vld [vmem:[#allocation2 + $0x10] sm:$0xff]
          %v568 = vld [vmem:[#allocation2 + $0x18] sm:$0xff]
          %569 = vst.msk [vmem:[%s209] sm:$0xff] %vm323, %v565
          %570 = vst.msk [vmem:[%s209 + $0x8] sm:$0xff] %vm323, %v566
          %571 = vst.msk [vmem:[%s209 + $0x10] sm:$0xff] %vm323, %v567
          %572 = vst.msk [vmem:[%s209 + $0x18] sm:$0xff] %vm323, %v568
        $region36: #{tpu_custom_call.1} parent=27 // pred_fallthru
          _
        %s573 = sand.u32 %s112, 1
        %s574 = scalar_lea.sflag [#allocation4], %s573
        %s575 = sand.u32 %s112, 1
        %s576 = smul.addr %s575, 32
        %s577 = scalar_lea.vmem [#allocation3], %s576
        // Predicated region
        $region37: #{tpu_custom_call.1} parent=27 // pred_check
          %p578 = pneg %p122
        $region38: #{tpu_custom_call.1} parent=27 // pred_check_branch
          %580 = sbr.rel (%p578) target = $region40
        $region39: #{tpu_custom_call.1} parent=27 // pred_region
          %s581 = smul.u32 4, %s24
          %s583 = ssub.s32 512, 512
          %584 = vsyncadd %s574, %s583
          %s585 = sadd.s32 %s23, %s581
          %s586 = smul.addr %s22, 4
          %s587 = sadd.s32 %s585, %s586
          %s588 = smul.addr %s587, 128
          %s589 = scalar_lea.hbm %s2, %s588
          %s590 = sshll.u32 %s577, 4
          %s591 = int_to_ptr.vmem [resolvable:$true] %s590
          %596 = dma.vmem_to_hbm [thread:$0]  %s591, 512, %s589, %s574, 128, 128, 8
        $region40: #{tpu_custom_call.1} parent=27 // pred_fallthru
          _
      $region28: #{tpu_custom_call.1} parent=5 // pred_fallthru
        _
      %p597 = scmp.le.s32.totalorder 2, %s11
      // Predicated region
      $region41: #{tpu_custom_call.1} parent=5 // pred_check
        %p598 = pneg %p597
      $region42: #{tpu_custom_call.1} parent=5 // pred_check_branch
        %600 = sbr.rel (%p598) target = $region44
      $region43: #{tpu_custom_call.1} parent=5 // pred_region
        %s601 = ssub.s32 %s11, 2
        // Predicated region
        $region45: #{tpu_custom_call.1} parent=43 // pred_check
          %p602 = pneg %p128
        $region46: #{tpu_custom_call.1} parent=43 // pred_check_branch
          %604 = sbr.rel (%p602) target = $region48
        $region47: #{tpu_custom_call.1} parent=43 // pred_region
          %s605 = sand.u32 %s113, 1
          %s606 = scalar_lea.sflag [#allocation4], %s605
          %s607 = sand.u32 %s113, 1
          %s608 = smul.addr %s607, 32
          %s609 = scalar_lea.vmem [#allocation3], %s608
          %610 = dma.done %s606, 512
        $region48: #{tpu_custom_call.1} parent=43 // pred_fallthru
          _
      $region44: #{tpu_custom_call.1} parent=5 // pred_fallthru
        _
    $region6: #{tpu_custom_call.1} parent=1 // loop_footer
      %s15 = sadd.s32 1, %s11
    $region7: #{tpu_custom_call.1} parent=1 // loop_footer_branch
      %10 = sbr.rel target = $region3
    $region8: #{tpu_custom_call.1} parent=1 // loop_exit
      _
    %611 = vsyncpa [#allocation4], 1
    %s612 = scalar_lea.sflag [#allocation4], 1
    %613 = vsyncpa %s612, 1

</llo_original>
